<compile_context>
chip_gen: v7x
topology: tpu7x:2x2x1
jax: 0.10.0
libtpu: 0.0.40
codegen_flags: <defaults>
</compile_context>

<pallas_src>
import functools

import numpy as np
import jax
import jax.numpy as jnp
from jax.experimental import pallas as pl
from jax.experimental.pallas import tpu as pltpu


def lambda_kernel(k_ref, nrow_ref, ncol_ref, o_ref, *, n_bins):
    # k_ref   : (P, P)  zero-padded K[p, q]
    # nrow_ref: (1, P)  n[q] on lanes (zero-padded)
    # ncol_ref: (P, 1)  n[p] on sublanes (zero-padded)
    # o_ref   : (1, P)  dn[i] on lanes
    npad = k_ref.shape[0]

    n_row = nrow_ref[...]                                     # (1, P)
    n_col = ncol_ref[...]                                     # (P, 1)

    lane = jax.lax.broadcasted_iota(jnp.int32, (1, npad), 1)  # q / i index
    sub = jax.lax.broadcasted_iota(jnp.int32, (npad, 1), 0)   # p index
    nm_row = jnp.where(lane >= 1, n_row, 0.0)                 # bin 0 excluded from sums

    # Single shared product; K is read exactly once.
    #   P[p, q] = K[p, q] * n[p] * nm[q]
    prod = k_ref[...] * n_col * nm_row                        # (P, P)

    # ---- loss:  n[i] * sum_{j>=1} K[i, j] * n[j]  ==  lane-reduce of P ------
    loss_col = jnp.sum(prod, axis=1, keepdims=True)           # (P, 1), indexed by i = p

    # ---- gain:  sum_{p+q==i, p>=1, q>=1} K[p, q] * n[p] * n[q] --------------
    # (q == 0 is already zeroed via nm_row; add the p >= 1 and p+q <= N-1 masks.)
    gain_terms = jnp.where((sub >= 1) & (sub + lane <= n_bins - 1), prod, 0.0)

    # Strided XLU roll: row p shifted right by p lanes, so element (p, q) lands on
    # lane p + q.  The mask above is applied BEFORE the roll, so circular wrap-around
    # only moves zeros.
    rolled = pltpu.roll(gain_terms, shift=0, axis=1, stride=1, stride_axis=0)

    # Fold the loss into the same sublane reduce by scattering loss_col onto the
    # diagonal (i.e. a (P,1)->(1,P) "transpose" with no relayout): at output lane i
    # the reduce then yields gain[i] - loss[i].
    combined = rolled - jnp.where(sub == lane, loss_col, 0.0)
    dn = jnp.sum(combined, axis=0, keepdims=True)             # (1, P)

    # torch clones n and never rewrites bin 0 -> dn[0] = n[0]
    o_ref[...] = jnp.where(lane == 0, n_row, dn)


def lambda_forward(t, n, K):
    """Mirrors Lambda.forward(t, n) with coagulation kernel matrix K."""
    del t  # the torch forward ignores t
    N = n.shape[0]
    npad = ((N + 127) // 128) * 128                           # lane/sublane-dense padding

    K_p = jnp.zeros((npad, npad), jnp.float32).at[:N, :N].set(K.astype(jnp.float32))
    n_p = jnp.zeros((npad,), jnp.float32).at[:N].set(n.astype(jnp.float32))

    # Single-block residency ~ a handful of (P,P) f32 tiles (shared product, masked
    # gain terms, rolled copy) on top of the double-buffered K input.
    vmem_limit = int(min(64 * 1024 * 1024,
                         max(16 * 1024 * 1024, 12 * npad * npad * 4)))

    out = pl.pallas_call(
        functools.partial(lambda_kernel, n_bins=N),
        out_shape=jax.ShapeDtypeStruct((1, npad), jnp.float32),
        grid=(1,),
        in_specs=[
            pl.BlockSpec((npad, npad), lambda i: (0, 0)),     # K (read once)
            pl.BlockSpec((1, npad), lambda i: (0, 0)),        # n as lane-dense row
            pl.BlockSpec((npad, 1), lambda i: (0, 0)),        # n as sublane column
        ],
        out_specs=pl.BlockSpec((1, npad), lambda i: (0, 0)),
        compiler_params=pltpu.CompilerParams(
            dimension_semantics=("arbitrary",),
            vmem_limit_bytes=vmem_limit),
    )(K_p, n_p.reshape(1, npad), n_p.reshape(npad, 1))
    return out.reshape(npad)[:N]


if __name__ == "__main__":
    N = 32  # stand-in for args.max_mass
    key = jax.random.PRNGKey(0)
    k_key, n_key = jax.random.split(key)
    n = jax.random.uniform(n_key, (N,), dtype=jnp.float32)    # concentrations
    t = jnp.float32(0.0)

    def reference(n_arr, K_arr):
        # Pure-numpy reference mirroring the torch double loop exactly.
        n_np = np.asarray(n_arr, dtype=np.float64)
        K_np = np.asarray(K_arr, dtype=np.float64)
        nn = n_np.shape[0]
        dn_ref = n_np.copy()
        for i in range(1, nn):
            a = sum(K_np[i - j, j] * n_np[i - j] * n_np[j] for j in range(1, i))
            b = sum(K_np[i, j] * n_np[j] for j in range(1, nn))
            dn_ref[i] = a - n_np[i] * b
        return dn_ref

    # 1) the module's kernel matrix: K = ones (as in the original script)
    K_ones = jnp.ones((N, N), dtype=jnp.float32)
    dn = jax.block_until_ready(lambda_forward(t, n, K_ones))
    np.testing.assert_allclose(np.asarray(dn), reference(n, K_ones),
                               rtol=1e-4, atol=1e-4)

    # 2) a non-symmetric K to exercise the general formula (catches any
    #    transposition / roll-direction mistakes that K = ones would hide)
    K_rand = jax.random.uniform(k_key, (N, N), dtype=jnp.float32)
    dn2 = jax.block_until_ready(lambda_forward(t, n, K_rand))
    np.testing.assert_allclose(np.asarray(dn2), reference(n, K_rand),
                               rtol=1e-4, atol=1e-4)

    print("KERNEL_OK")
</pallas_src>

<mosaic_0001>
module attributes {stable_mosaic.version = 11 : i64} {
  func.func @lambda_kernel(%arg0: i32, %arg1: memref<128x128xf32, #tpu.memory_space<vmem>>, %arg2: memref<1x128xf32, #tpu.memory_space<vmem>>, %arg3: memref<128x1xf32, #tpu.memory_space<vmem>>, %arg4: memref<1x128xf32, #tpu.memory_space<vmem>>) attributes {dimension_semantics = [#tpu.dimension_semantics<arbitrary>], iteration_bounds = array<i64: 1>, scalar_prefetch = 0 : i64, scratch_operands = 0 : i64, tpu.core_type = #tpu.core_type<tc>, window_params = [{pipeline_mode = #tpu.pipeline_mode<synchronous>, transform_indices = @transform_0, window_bounds = array<i64: 128, 128>}, {pipeline_mode = #tpu.pipeline_mode<synchronous>, transform_indices = @transform_1, window_bounds = array<i64: 1, 128>}, {pipeline_mode = #tpu.pipeline_mode<synchronous>, transform_indices = @transform_2, window_bounds = array<i64: 128, 1>}, {pipeline_mode = #tpu.pipeline_mode<synchronous>, transform_indices = @transform_3, window_bounds = array<i64: 1, 128>}]} {
    %c0 = arith.constant 0 : index
    %c0_0 = arith.constant 0 : index
    %0 = vector.load %arg2[%c0, %c0_0] : memref<1x128xf32, #tpu.memory_space<vmem>>, vector<1x128xf32>
    %c0_1 = arith.constant 0 : index
    %c0_2 = arith.constant 0 : index
    %1 = vector.load %arg3[%c0_1, %c0_2] : memref<128x1xf32, #tpu.memory_space<vmem>>, vector<128x1xf32>
    %2 = tpu.iota {dimensions = array<i32: 1>} : vector<1x128xi32>
    %3 = tpu.iota {dimensions = array<i32: 0>} : vector<128x1xi32>
    %c1_i32 = arith.constant 1 : i32
    %4 = vector.broadcast %c1_i32 : i32 to vector<1x128xi32>
    %5 = arith.cmpi sge, %2, %4 : vector<1x128xi32>
    %cst = arith.constant 0.000000e+00 : f32
    %6 = vector.broadcast %cst : f32 to vector<1x128xf32>
    %7 = arith.select %5, %0, %6 : vector<1x128xi1>, vector<1x128xf32>
    %c0_3 = arith.constant 0 : index
    %c0_4 = arith.constant 0 : index
    %8 = vector.load %arg1[%c0_3, %c0_4] : memref<128x128xf32, #tpu.memory_space<vmem>>, vector<128x128xf32>
    %9 = vector.broadcast %1 : vector<128x1xf32> to vector<128x128xf32>
    %10 = arith.mulf %8, %9 : vector<128x128xf32>
    %11 = vector.broadcast %7 : vector<1x128xf32> to vector<128x128xf32>
    %12 = arith.mulf %10, %11 : vector<128x128xf32>
    %cst_5 = arith.constant dense<0.000000e+00> : vector<128xf32>
    %13 = vector.multi_reduction <add>, %12, %cst_5 [1] : vector<128x128xf32> to vector<128xf32>
    %14 = vector.shape_cast %13 : vector<128xf32> to vector<128x1xf32>
    %c1_i32_6 = arith.constant 1 : i32
    %15 = vector.broadcast %c1_i32_6 : i32 to vector<128x1xi32>
    %16 = arith.cmpi sge, %3, %15 : vector<128x1xi32>
    %17 = vector.broadcast %3 : vector<128x1xi32> to vector<128x128xi32>
    %18 = vector.broadcast %2 : vector<1x128xi32> to vector<128x128xi32>
    %19 = arith.addi %17, %18 : vector<128x128xi32>
    %c31_i32 = arith.constant 31 : i32
    %20 = vector.broadcast %c31_i32 : i32 to vector<128x128xi32>
    %21 = arith.cmpi sle, %19, %20 : vector<128x128xi32>
    %22 = vector.broadcast %16 : vector<128x1xi1> to vector<128x128xi1>
    %23 = arith.andi %22, %21 : vector<128x128xi1>
    %cst_7 = arith.constant 0.000000e+00 : f32
    %24 = vector.broadcast %cst_7 : f32 to vector<128x128xf32>
    %25 = arith.select %23, %12, %24 : vector<128x128xi1>, vector<128x128xf32>
    %c0_i32 = arith.constant 0 : i32
    %26 = tpu.dynamic_rotate %25 by %c0_i32 dim 1 {stride = 1 : si32, stride_dimension = 0 : si32} : vector<128x128xf32>, i32 -> vector<128x128xf32>
    %27 = vector.broadcast %3 : vector<128x1xi32> to vector<128x128xi32>
    %28 = vector.broadcast %2 : vector<1x128xi32> to vector<128x128xi32>
    %29 = arith.cmpi eq, %27, %28 : vector<128x128xi32>
    %cst_8 = arith.constant 0.000000e+00 : f32
    %30 = vector.shape_cast %14 : vector<128x1xf32> to vector<128x1xf32>
    %31 = vector.broadcast %30 : vector<128x1xf32> to vector<128x128xf32>
    %32 = vector.broadcast %cst_8 : f32 to vector<128x128xf32>
    %33 = arith.select %29, %31, %32 : vector<128x128xi1>, vector<128x128xf32>
    %34 = arith.subf %26, %33 : vector<128x128xf32>
    %cst_9 = arith.constant dense<0.000000e+00> : vector<128xf32>
    %35 = vector.multi_reduction <add>, %34, %cst_9 [0] : vector<128x128xf32> to vector<128xf32>
    %36 = vector.shape_cast %35 : vector<128xf32> to vector<1x128xf32>
    %c0_i32_10 = arith.constant 0 : i32
    %37 = vector.broadcast %c0_i32_10 : i32 to vector<1x128xi32>
    %38 = arith.cmpi eq, %2, %37 : vector<1x128xi32>
    %39 = arith.select %38, %0, %36 : vector<1x128xi1>, vector<1x128xf32>
    %c0_11 = arith.constant 0 : index
    %c0_12 = arith.constant 0 : index
    %40 = vector.load %arg4[%c0_11, %c0_12] : memref<1x128xf32, #tpu.memory_space<vmem>>, vector<1x128xf32>
    tpu.vector_store %arg4[%c0_11, %c0_12], %39 {strides = array<i32>} : memref<1x128xf32, #tpu.memory_space<vmem>>, vector<1x128xf32>,
    return
  }
  func.func @transform_0(%arg0: i32) -> (i32, i32) {
    %c0_i32 = arith.constant 0 : i32
    %c0_i32_0 = arith.constant 0 : i32
    %c0_i32_1 = arith.constant 0 : i32
    return %c0_i32, %c0_i32_0 : i32, i32
  }
  func.func @transform_1(%arg0: i32) -> (i32, i32) {
    %c0_i32 = arith.constant 0 : i32
    %c0_i32_0 = arith.constant 0 : i32
    %c0_i32_1 = arith.constant 0 : i32
    return %c0_i32, %c0_i32_0 : i32, i32
  }
  func.func @transform_2(%arg0: i32) -> (i32, i32) {
    %c0_i32 = arith.constant 0 : i32
    %c0_i32_0 = arith.constant 0 : i32
    %c0_i32_1 = arith.constant 0 : i32
    return %c0_i32, %c0_i32_0 : i32, i32
  }
  func.func @transform_3(%arg0: i32) -> (i32, i32) {
    %c0_i32 = arith.constant 0 : i32
    %c0_i32_0 = arith.constant 0 : i32
    %c0_i32_1 = arith.constant 0 : i32
    return %c0_i32, %c0_i32_0 : i32, i32
  }
}

</mosaic_0001>

<llo_original>
// kernel: tpu_custom_call.1
$region0: #{tpu_custom_call.1}
  #allocation0 [shape = 'u32[]', space=smem, size = 0x4, offset = 0x4, fixed_abs, tag = 'smem constant byte address 0x4 - core index']
  #allocation1 [shape = 'u32[144,128]{1,0:T(1,128)}', space=vmem, size = 0x12000, scoped, tag = 'internal scratch']
  %s0 = inlined_call_operand.vmem [shape: f32[128,128], index: 0, kind: input, shape index: {}]
  %s1 = inlined_call_operand.vmem [shape: f32[1,128], index: 1, kind: input, shape index: {}]
  %s2 = inlined_call_operand.vmem [shape: f32[128,1], index: 2, kind: input, shape index: {}]
  %s3 = inlined_call_operand.hbm [shape: f32[1,128], index: 3, kind: output, shape index: {}]
  %s4 = sld [smem:[#allocation0]]
  $region22: #{tpu_custom_call.1} parent=0
    _
  %s6 = ssub.s32 1, %s4
  %s7 = scalar_select 0, %s6, %s4
  $region1: #{tpu_custom_call.1} parent=0
    #allocation2 [shape = 'u8[512]{0}', space=vmem, size = 0x400, scoped, tag = 'output window, operand 0, single buffered']
    #allocation3 [shape = 's32[1]{0}', space=sflag, size = 0x4, scoped, tag = 'scoped memory for tpu_custom_call.1']
    %8 = vsyncpa [#allocation3], 0
    // Predicated region
    $region2: #{tpu_custom_call.1} parent=1 // pred_check
      _
    $region3: #{tpu_custom_call.1} parent=1 // pred_check_branch
      %10 = sbr.rel (0) target = $region5
    $region4: #{tpu_custom_call.1} parent=1 // pred_region
      _
    $region5: #{tpu_custom_call.1} parent=1 // pred_fallthru
      _
    // Predicated region
    $region6: #{tpu_custom_call.1} parent=1 // pred_check
      _
    $region7: #{tpu_custom_call.1} parent=1 // pred_check_branch
      %12 = sbr.rel (0) target = $region9
    $region8: #{tpu_custom_call.1} parent=1 // pred_region
      _
    $region9: #{tpu_custom_call.1} parent=1 // pred_fallthru
      _
    // Predicated region
    $region10: #{tpu_custom_call.1} parent=1 // pred_check
      _
    $region11: #{tpu_custom_call.1} parent=1 // pred_check_branch
      %14 = sbr.rel (0) target = $region13
    $region12: #{tpu_custom_call.1} parent=1 // pred_region
      _
    $region13: #{tpu_custom_call.1} parent=1 // pred_fallthru
      _
    %v15 = vld [vmem:[%s1] sm:$0x1]
    %v16 = vld [vmem:[%s2] sm:$0xff]
    %v17 = vld [vmem:[%s2 + $0x8] sm:$0xff]
    %v18 = vld [vmem:[%s2 + $0x10] sm:$0xff]
    %v19 = vld [vmem:[%s2 + $0x18] sm:$0xff]
    %v20 = vld [vmem:[%s2 + $0x20] sm:$0xff]
    %v21 = vld [vmem:[%s2 + $0x28] sm:$0xff]
    %v22 = vld [vmem:[%s2 + $0x30] sm:$0xff]
    %v23 = vld [vmem:[%s2 + $0x38] sm:$0xff]
    %v24 = vld [vmem:[%s2 + $0x40] sm:$0xff]
    %v25 = vld [vmem:[%s2 + $0x48] sm:$0xff]
    %v26 = vld [vmem:[%s2 + $0x50] sm:$0xff]
    %v27 = vld [vmem:[%s2 + $0x58] sm:$0xff]
    %v28 = vld [vmem:[%s2 + $0x60] sm:$0xff]
    %v29 = vld [vmem:[%s2 + $0x68] sm:$0xff]
    %v30 = vld [vmem:[%s2 + $0x70] sm:$0xff]
    %v31 = vld [vmem:[%s2 + $0x78] sm:$0xff]
    %v32 = vlaneseq
    %v33 = vand.u32 %v32, 127
    %v34 = vlaneseq
    %v35 = vshrl.u32 %v34, 7
    %v36 = vadd.s32 %v35, 8
    %v37 = vadd.s32 %v35, 16
    %v38 = vadd.s32 %v35, 24
    %v39 = vadd.s32 %v35, 32
    %v40 = vadd.s32 %v35, 40
    %v41 = vadd.s32 %v35, 48
    %v42 = vadd.s32 %v35, 56
    %v43 = vadd.s32 %v35, 64
    %v44 = vadd.s32 %v35, 72
    %v45 = vadd.s32 %v35, 80
    %v46 = vadd.s32 %v35, 88
    %v47 = vadd.s32 %v35, 96
    %v48 = vadd.s32 %v35, 104
    %v49 = vadd.s32 %v35, 112
    %v50 = vadd.s32 %v35, 120
    %vm51 = vcmp.ge.s32.totalorder %v33, 1
    %v52 = vsel %vm51, %v15, 0.0
    %v53 = vld [vmem:[%s0] sm:$0xff]
    %v54 = vld [vmem:[%s0 + $0x8] sm:$0xff]
    %v55 = vld [vmem:[%s0 + $0x10] sm:$0xff]
    %v56 = vld [vmem:[%s0 + $0x18] sm:$0xff]
    %v57 = vld [vmem:[%s0 + $0x20] sm:$0xff]
    %v58 = vld [vmem:[%s0 + $0x28] sm:$0xff]
    %v59 = vld [vmem:[%s0 + $0x30] sm:$0xff]
    %v60 = vld [vmem:[%s0 + $0x38] sm:$0xff]
    %v61 = vld [vmem:[%s0 + $0x40] sm:$0xff]
    %v62 = vld [vmem:[%s0 + $0x48] sm:$0xff]
    %v63 = vld [vmem:[%s0 + $0x50] sm:$0xff]
    %v64 = vld [vmem:[%s0 + $0x58] sm:$0xff]
    %v65 = vld [vmem:[%s0 + $0x60] sm:$0xff]
    %v66 = vld [vmem:[%s0 + $0x68] sm:$0xff]
    %v67 = vld [vmem:[%s0 + $0x70] sm:$0xff]
    %v68 = vld [vmem:[%s0 + $0x78] sm:$0xff]
    %70 = vset.pattern.permute.xlu0 0
    %71 = vperm.xlu0 %70, %v16
    %v72 = vpop.permute.xlu0 %71
    %75 = vset.pattern.permute.xlu0 0
    %76 = vperm.xlu0 %75, %v17
    %v77 = vpop.permute.xlu0 %76
    %80 = vset.pattern.permute.xlu0 0
    %81 = vperm.xlu0 %80, %v18
    %v82 = vpop.permute.xlu0 %81
    %85 = vset.pattern.permute.xlu0 0
    %86 = vperm.xlu0 %85, %v19
    %v87 = vpop.permute.xlu0 %86
    %90 = vset.pattern.permute.xlu0 0
    %91 = vperm.xlu0 %90, %v20
    %v92 = vpop.permute.xlu0 %91
    %95 = vset.pattern.permute.xlu0 0
    %96 = vperm.xlu0 %95, %v21
    %v97 = vpop.permute.xlu0 %96
    %100 = vset.pattern.permute.xlu0 0
    %101 = vperm.xlu0 %100, %v22
    %v102 = vpop.permute.xlu0 %101
    %105 = vset.pattern.permute.xlu0 0
    %106 = vperm.xlu0 %105, %v23
    %v107 = vpop.permute.xlu0 %106
    %110 = vset.pattern.permute.xlu0 0
    %111 = vperm.xlu0 %110, %v24
    %v112 = vpop.permute.xlu0 %111
    %115 = vset.pattern.permute.xlu0 0
    %116 = vperm.xlu0 %115, %v25
    %v117 = vpop.permute.xlu0 %116
    %120 = vset.pattern.permute.xlu0 0
    %121 = vperm.xlu0 %120, %v26
    %v122 = vpop.permute.xlu0 %121
    %125 = vset.pattern.permute.xlu0 0
    %126 = vperm.xlu0 %125, %v27
    %v127 = vpop.permute.xlu0 %126
    %130 = vset.pattern.permute.xlu0 0
    %131 = vperm.xlu0 %130, %v28
    %v132 = vpop.permute.xlu0 %131
    %135 = vset.pattern.permute.xlu0 0
    %136 = vperm.xlu0 %135, %v29
    %v137 = vpop.permute.xlu0 %136
    %140 = vset.pattern.permute.xlu0 0
    %141 = vperm.xlu0 %140, %v30
    %v142 = vpop.permute.xlu0 %141
    %145 = vset.pattern.permute.xlu0 0
    %146 = vperm.xlu0 %145, %v31
    %v147 = vpop.permute.xlu0 %146
    %v149 = vmul.f32 %v53, %v72
    %v150 = vmul.f32 %v54, %v77
    %v151 = vmul.f32 %v55, %v82
    %v152 = vmul.f32 %v56, %v87
    %v153 = vmul.f32 %v57, %v92
    %v154 = vmul.f32 %v58, %v97
    %v155 = vmul.f32 %v59, %v102
    %v156 = vmul.f32 %v60, %v107
    %v157 = vmul.f32 %v61, %v112
    %v158 = vmul.f32 %v62, %v117
    %v159 = vmul.f32 %v63, %v122
    %v160 = vmul.f32 %v64, %v127
    %v161 = vmul.f32 %v65, %v132
    %v162 = vmul.f32 %v66, %v137
    %v163 = vmul.f32 %v67, %v142
    %v164 = vmul.f32 %v68, %v147
    %v165 = vlaneseq
    %v166 = vshrl.u32 %v165, 7
    %v167 = vsub.s32 0, %v166
    %v168 = vrot.slane %v52, %v167
    %v169 = vmul.f32 %v149, %v168
    %v170 = vmul.f32 %v150, %v168
    %v171 = vmul.f32 %v151, %v168
    %v172 = vmul.f32 %v152, %v168
    %v173 = vmul.f32 %v153, %v168
    %v174 = vmul.f32 %v154, %v168
    %v175 = vmul.f32 %v155, %v168
    %v176 = vmul.f32 %v156, %v168
    %v177 = vmul.f32 %v157, %v168
    %v178 = vmul.f32 %v158, %v168
    %v179 = vmul.f32 %v159, %v168
    %v180 = vmul.f32 %v160, %v168
    %v181 = vmul.f32 %v161, %v168
    %v182 = vmul.f32 %v162, %v168
    %v183 = vmul.f32 %v163, %v168
    %v184 = vmul.f32 %v164, %v168
    %185 = vadd.xlane.f32.xlu0 %v169
    %v186 = vpop.xlane.xlu0 %185
    %187 = vadd.xlane.f32.xlu0 %v170
    %v188 = vpop.xlane.xlu0 %187
    %189 = vadd.xlane.f32.xlu0 %v171
    %v190 = vpop.xlane.xlu0 %189
    %191 = vadd.xlane.f32.xlu0 %v172
    %v192 = vpop.xlane.xlu0 %191
    %193 = vadd.xlane.f32.xlu0 %v173
    %v194 = vpop.xlane.xlu0 %193
    %195 = vadd.xlane.f32.xlu0 %v174
    %v196 = vpop.xlane.xlu0 %195
    %197 = vadd.xlane.f32.xlu0 %v175
    %v198 = vpop.xlane.xlu0 %197
    %199 = vadd.xlane.f32.xlu0 %v176
    %v200 = vpop.xlane.xlu0 %199
    %201 = vadd.xlane.f32.xlu0 %v177
    %v202 = vpop.xlane.xlu0 %201
    %203 = vadd.xlane.f32.xlu0 %v178
    %v204 = vpop.xlane.xlu0 %203
    %205 = vadd.xlane.f32.xlu0 %v179
    %v206 = vpop.xlane.xlu0 %205
    %207 = vadd.xlane.f32.xlu0 %v180
    %v208 = vpop.xlane.xlu0 %207
    %209 = vadd.xlane.f32.xlu0 %v181
    %v210 = vpop.xlane.xlu0 %209
    %211 = vadd.xlane.f32.xlu0 %v182
    %v212 = vpop.xlane.xlu0 %211
    %213 = vadd.xlane.f32.xlu0 %v183
    %v214 = vpop.xlane.xlu0 %213
    %215 = vadd.xlane.f32.xlu0 %v184
    %v216 = vpop.xlane.xlu0 %215
    %vm217 = vcmp.ge.s32.totalorder %v35, 1
    %vm218 = vcmp.ge.s32.totalorder %v36, 1
    %vm219 = vcmp.ge.s32.totalorder %v37, 1
    %vm220 = vcmp.ge.s32.totalorder %v38, 1
    %vm221 = vcmp.ge.s32.totalorder %v39, 1
    %vm222 = vcmp.ge.s32.totalorder %v40, 1
    %vm223 = vcmp.ge.s32.totalorder %v41, 1
    %vm224 = vcmp.ge.s32.totalorder %v42, 1
    %vm225 = vcmp.ge.s32.totalorder %v43, 1
    %vm226 = vcmp.ge.s32.totalorder %v44, 1
    %vm227 = vcmp.ge.s32.totalorder %v45, 1
    %vm228 = vcmp.ge.s32.totalorder %v46, 1
    %vm229 = vcmp.ge.s32.totalorder %v47, 1
    %vm230 = vcmp.ge.s32.totalorder %v48, 1
    %vm231 = vcmp.ge.s32.totalorder %v49, 1
    %vm232 = vcmp.ge.s32.totalorder %v50, 1
    %v233 = vadd.s32 %v35, %v33
    %v234 = vadd.s32 %v36, %v33
    %v235 = vadd.s32 %v37, %v33
    %v236 = vadd.s32 %v38, %v33
    %v237 = vadd.s32 %v39, %v33
    %v238 = vadd.s32 %v40, %v33
    %v239 = vadd.s32 %v41, %v33
    %v240 = vadd.s32 %v42, %v33
    %v241 = vadd.s32 %v43, %v33
    %v242 = vadd.s32 %v44, %v33
    %v243 = vadd.s32 %v45, %v33
    %v244 = vadd.s32 %v46, %v33
    %v245 = vadd.s32 %v47, %v33
    %v246 = vadd.s32 %v48, %v33
    %v247 = vadd.s32 %v49, %v33
    %v248 = vadd.s32 %v50, %v33
    %vm249 = vcmp.le.s32.totalorder %v233, 31
    %vm250 = vcmp.le.s32.totalorder %v234, 31
    %vm251 = vcmp.le.s32.totalorder %v235, 31
    %vm252 = vcmp.le.s32.totalorder %v236, 31
    %vm253 = vcmp.le.s32.totalorder %v237, 31
    %vm254 = vcmp.le.s32.totalorder %v238, 31
    %vm255 = vcmp.le.s32.totalorder %v239, 31
    %vm256 = vcmp.le.s32.totalorder %v240, 31
    %vm257 = vcmp.le.s32.totalorder %v241, 31
    %vm258 = vcmp.le.s32.totalorder %v242, 31
    %vm259 = vcmp.le.s32.totalorder %v243, 31
    %vm260 = vcmp.le.s32.totalorder %v244, 31
    %vm261 = vcmp.le.s32.totalorder %v245, 31
    %vm262 = vcmp.le.s32.totalorder %v246, 31
    %vm263 = vcmp.le.s32.totalorder %v247, 31
    %vm264 = vcmp.le.s32.totalorder %v248, 31
    %v265 = vsel %vm217, 1, 0
    %v266 = vsel %vm218, 1, 0
    %v267 = vsel %vm219, 1, 0
    %v268 = vsel %vm220, 1, 0
    %v269 = vsel %vm221, 1, 0
    %v270 = vsel %vm222, 1, 0
    %v271 = vsel %vm223, 1, 0
    %v272 = vsel %vm224, 1, 0
    %v273 = vsel %vm225, 1, 0
    %v274 = vsel %vm226, 1, 0
    %v275 = vsel %vm227, 1, 0
    %v276 = vsel %vm228, 1, 0
    %v277 = vsel %vm229, 1, 0
    %v278 = vsel %vm230, 1, 0
    %v279 = vsel %vm231, 1, 0
    %v280 = vsel %vm232, 1, 0
    %vm281 = vcmp.eq.s32.totalorder %v265, 1
    %vm282 = vcmp.eq.s32.totalorder %v266, 1
    %vm283 = vcmp.eq.s32.totalorder %v267, 1
    %vm284 = vcmp.eq.s32.totalorder %v268, 1
    %vm285 = vcmp.eq.s32.totalorder %v269, 1
    %vm286 = vcmp.eq.s32.totalorder %v270, 1
    %vm287 = vcmp.eq.s32.totalorder %v271, 1
    %vm288 = vcmp.eq.s32.totalorder %v272, 1
    %vm289 = vcmp.eq.s32.totalorder %v273, 1
    %vm290 = vcmp.eq.s32.totalorder %v274, 1
    %vm291 = vcmp.eq.s32.totalorder %v275, 1
    %vm292 = vcmp.eq.s32.totalorder %v276, 1
    %vm293 = vcmp.eq.s32.totalorder %v277, 1
    %vm294 = vcmp.eq.s32.totalorder %v278, 1
    %vm295 = vcmp.eq.s32.totalorder %v279, 1
    %vm296 = vcmp.eq.s32.totalorder %v280, 1
    %vm297 = vmand %vm281, %vm249
    %vm298 = vmand %vm282, %vm250
    %vm299 = vmand %vm283, %vm251
    %vm300 = vmand %vm284, %vm252
    %vm301 = vmand %vm285, %vm253
    %vm302 = vmand %vm286, %vm254
    %vm303 = vmand %vm287, %vm255
    %vm304 = vmand %vm288, %vm256
    %vm305 = vmand %vm289, %vm257
    %vm306 = vmand %vm290, %vm258
    %vm307 = vmand %vm291, %vm259
    %vm308 = vmand %vm292, %vm260
    %vm309 = vmand %vm293, %vm261
    %vm310 = vmand %vm294, %vm262
    %vm311 = vmand %vm295, %vm263
    %vm312 = vmand %vm296, %vm264
    %v313 = vsel %vm297, %v169, 0.0
    %v314 = vsel %vm298, %v170, 0.0
    %v315 = vsel %vm299, %v171, 0.0
    %v316 = vsel %vm300, %v172, 0.0
    %v317 = vsel %vm301, %v173, 0.0
    %v318 = vsel %vm302, %v174, 0.0
    %v319 = vsel %vm303, %v175, 0.0
    %v320 = vsel %vm304, %v176, 0.0
    %v321 = vsel %vm305, %v177, 0.0
    %v322 = vsel %vm306, %v178, 0.0
    %v323 = vsel %vm307, %v179, 0.0
    %v324 = vsel %vm308, %v180, 0.0
    %v325 = vsel %vm309, %v181, 0.0
    %v326 = vsel %vm310, %v182, 0.0
    %v327 = vsel %vm311, %v183, 0.0
    %v328 = vsel %vm312, %v184, 0.0
    %330 = vrot.lane.b32.xlu0 %v313, 256
    %v331 = vpop.permute.xlu0 %330
    %s333 = sor.u32 256, 8
    %334 = vrot.lane.b32.xlu0 %v314, %s333
    %v335 = vpop.permute.xlu0 %334
    %s337 = sor.u32 256, 16
    %338 = vrot.lane.b32.xlu0 %v315, %s337
    %v339 = vpop.permute.xlu0 %338
    %s341 = sor.u32 256, 24
    %342 = vrot.lane.b32.xlu0 %v316, %s341
    %v343 = vpop.permute.xlu0 %342
    %s345 = sor.u32 256, 32
    %346 = vrot.lane.b32.xlu0 %v317, %s345
    %v347 = vpop.permute.xlu0 %346
    %s349 = sor.u32 256, 40
    %350 = vrot.lane.b32.xlu0 %v318, %s349
    %v351 = vpop.permute.xlu0 %350
    %s353 = sor.u32 256, 48
    %354 = vrot.lane.b32.xlu0 %v319, %s353
    %v355 = vpop.permute.xlu0 %354
    %s357 = sor.u32 256, 56
    %358 = vrot.lane.b32.xlu0 %v320, %s357
    %v359 = vpop.permute.xlu0 %358
    %s361 = sor.u32 256, 64
    %362 = vrot.lane.b32.xlu0 %v321, %s361
    %v363 = vpop.permute.xlu0 %362
    %s365 = sor.u32 256, 72
    %366 = vrot.lane.b32.xlu0 %v322, %s365
    %v367 = vpop.permute.xlu0 %366
    %s369 = sor.u32 256, 80
    %370 = vrot.lane.b32.xlu0 %v323, %s369
    %v371 = vpop.permute.xlu0 %370
    %s373 = sor.u32 256, 88
    %374 = vrot.lane.b32.xlu0 %v324, %s373
    %v375 = vpop.permute.xlu0 %374
    %s377 = sor.u32 256, 96
    %378 = vrot.lane.b32.xlu0 %v325, %s377
    %v379 = vpop.permute.xlu0 %378
    %s381 = sor.u32 256, 104
    %382 = vrot.lane.b32.xlu0 %v326, %s381
    %v383 = vpop.permute.xlu0 %382
    %s385 = sor.u32 256, 112
    %386 = vrot.lane.b32.xlu0 %v327, %s385
    %v387 = vpop.permute.xlu0 %386
    %s389 = sor.u32 256, 120
    %390 = vrot.lane.b32.xlu0 %v328, %s389
    %v391 = vpop.permute.xlu0 %390
    %vm392 = vcmp.eq.s32.totalorder %v35, %v33
    %vm393 = vcmp.eq.s32.totalorder %v36, %v33
    %vm394 = vcmp.eq.s32.totalorder %v37, %v33
    %vm395 = vcmp.eq.s32.totalorder %v38, %v33
    %vm396 = vcmp.eq.s32.totalorder %v39, %v33
    %vm397 = vcmp.eq.s32.totalorder %v40, %v33
    %vm398 = vcmp.eq.s32.totalorder %v41, %v33
    %vm399 = vcmp.eq.s32.totalorder %v42, %v33
    %vm400 = vcmp.eq.s32.totalorder %v43, %v33
    %vm401 = vcmp.eq.s32.totalorder %v44, %v33
    %vm402 = vcmp.eq.s32.totalorder %v45, %v33
    %vm403 = vcmp.eq.s32.totalorder %v46, %v33
    %vm404 = vcmp.eq.s32.totalorder %v47, %v33
    %vm405 = vcmp.eq.s32.totalorder %v48, %v33
    %vm406 = vcmp.eq.s32.totalorder %v49, %v33
    %vm407 = vcmp.eq.s32.totalorder %v50, %v33
    %v408 = vsel %vm392, %v186, 0.0
    %v409 = vsel %vm393, %v188, 0.0
    %v410 = vsel %vm394, %v190, 0.0
    %v411 = vsel %vm395, %v192, 0.0
    %v412 = vsel %vm396, %v194, 0.0
    %v413 = vsel %vm397, %v196, 0.0
    %v414 = vsel %vm398, %v198, 0.0
    %v415 = vsel %vm399, %v200, 0.0
    %v416 = vsel %vm400, %v202, 0.0
    %v417 = vsel %vm401, %v204, 0.0
    %v418 = vsel %vm402, %v206, 0.0
    %v419 = vsel %vm403, %v208, 0.0
    %v420 = vsel %vm404, %v210, 0.0
    %v421 = vsel %vm405, %v212, 0.0
    %v422 = vsel %vm406, %v214, 0.0
    %v423 = vsel %vm407, %v216, 0.0
    %v424 = vsub.f32 %v331, %v408
    %v425 = vsub.f32 %v335, %v409
    %v426 = vsub.f32 %v339, %v410
    %v427 = vsub.f32 %v343, %v411
    %v428 = vsub.f32 %v347, %v412
    %v429 = vsub.f32 %v351, %v413
    %v430 = vsub.f32 %v355, %v414
    %v431 = vsub.f32 %v359, %v415
    %v432 = vsub.f32 %v363, %v416
    %v433 = vsub.f32 %v367, %v417
    %v434 = vsub.f32 %v371, %v418
    %v435 = vsub.f32 %v375, %v419
    %v436 = vsub.f32 %v379, %v420
    %v437 = vsub.f32 %v383, %v421
    %v438 = vsub.f32 %v387, %v422
    %v439 = vsub.f32 %v391, %v423
    %v440 = vadd.f32 %v424, %v425
    %v441 = vadd.f32 %v440, %v426
    %v442 = vadd.f32 %v441, %v427
    %v443 = vadd.f32 %v442, %v428
    %v444 = vadd.f32 %v443, %v429
    %v445 = vadd.f32 %v444, %v430
    %v446 = vadd.f32 %v445, %v431
    %v447 = vadd.f32 %v446, %v432
    %v448 = vadd.f32 %v447, %v433
    %v449 = vadd.f32 %v448, %v434
    %v450 = vadd.f32 %v449, %v435
    %v451 = vadd.f32 %v450, %v436
    %v452 = vadd.f32 %v451, %v437
    %v453 = vadd.f32 %v452, %v438
    %v454 = vadd.f32 %v453, %v439
    %v455 = vrot.slane %v454, 4
    %v456 = vadd.f32 %v454, %v455
    %v457 = vrot.slane %v456, 2
    %v458 = vadd.f32 %v456, %v457
    %v459 = vrot.slane %v458, 1
    %v460 = vadd.f32 %v458, %v459
    %vm461 = vcmp.eq.s32.totalorder %v33, 0
    %v462 = vsel %vm461, %v15, %v460
    %463 = vst [vmem:[#allocation2] sm:$0x1] %v462
    // Predicated region
    $region14: #{tpu_custom_call.1} parent=1 // pred_check
      _
    $region15: #{tpu_custom_call.1} parent=1 // pred_check_branch
      %465 = sbr.rel (0) target = $region17
    $region16: #{tpu_custom_call.1} parent=1 // pred_region
      %s467 = ssub.s32 16, 16
      %468 = vsyncadd [#allocation3], %s467
      %s470 = sshll.u32 [#allocation2], 4
      %s471 = int_to_ptr.vmem [resolvable:$true] %s470
      %473 = dma.vmem_to_hbm [thread:$0]  %s471, 16, %s3, [#allocation3]
    $region17: #{tpu_custom_call.1} parent=1 // pred_fallthru
      _
    // Predicated region
    $region18: #{tpu_custom_call.1} parent=1 // pred_check
      _
    $region19: #{tpu_custom_call.1} parent=1 // pred_check_branch
      %475 = sbr.rel (0) target = $region21
    $region20: #{tpu_custom_call.1} parent=1 // pred_region
      %476 = dma.done [#allocation3], 16
    $region21: #{tpu_custom_call.1} parent=1 // pred_fallthru
      _
    %477 = vsyncpa [#allocation3], 1

</llo_original>
